<compile_context>
chip_gen: v5e
topology: v5e:2x2
jax: 0.10.0
libtpu: 0.0.40
codegen_flags: <defaults>
</compile_context>

<pallas_src>
import jax
import jax.numpy as jnp
from jax.experimental import pallas as pl
from jax.experimental.pallas import tpu as pltpu

OBS_DIM = 2
ACTION_DIM = 1
HIDDEN = 64
INITIAL_STD = 1.0

LANES = 128                       # lane width of the fused layers
FUSED = 2 * HIDDEN                # 128: fused (policy | value) hidden width
assert FUSED == LANES

IN_LANES = 8                      # padded obs lanes: [obs0, obs1, 1.0, 0 x5]
OUT_LANES = 8                     # packed output lanes: [mean, value, std, 0 x5]

# --- packed parameter slab layout (rows of a (SLAB_ROWS, 128) f32 array) ---
# rows [0, OBS_DIM)          : W1_cat  = [pi_w1 | v_w1]            (OBS_DIM, 128)
# row  R_B1                  : b1_cat  = [pi_b1 | v_b1]            (1, 128)
# row  R_B2                  : b2_cat  = [pi_b2 | v_b2]            (1, 128)
# row  R_B3                  : [pi_b3 | v_b3 | exp(log_std) | 0..] (1, 128)
# rows [R_W2, R_W2+128)      : W2 block-diag(pi_w2, v_w2)          (128, 128)
# rows [R_W3, R_W3+128)      : W3: cols [0,A)=pi_w3, col A=v_w3    (128, 128)
R_B1 = OBS_DIM                    # 2  -> picked up by the constant-1.0 obs lane
R_B2 = OBS_DIM + 1                # 3
R_B3 = OBS_DIM + 2                # 4
R_W2 = 8                          # 8-aligned so the big slices stay tile-aligned
R_W3 = R_W2 + FUSED
SLAB_ROWS = R_W3 + FUSED          # 264

# output slab lane layout
MEAN_LO, MEAN_HI = 0, ACTION_DIM
VALUE_LANE = ACTION_DIM
STD_LO, STD_HI = ACTION_DIM + 1, 2 * ACTION_DIM + 1


def _ppo_fused_kernel(x_ref, slab_ref, out_ref):
    x8 = x_ref[...]                                    # (TB, 8): [obs0, obs1, 1, 0..]

    w1 = slab_ref[0:IN_LANES, :]                       # rows: W1_0, W1_1, b1, b2, b3, 0,0,0
    b2 = slab_ref[R_B2:R_B2 + 1, :]                    # (1, 128)
    b3 = slab_ref[R_B3:R_B3 + 1, :]                    # (1, 128) [pi_b3|v_b3|exp(log_std)|0]
    w2 = slab_ref[R_W2:R_W2 + FUSED, :]                # (128, 128) block-diag
    w3 = slab_ref[R_W3:R_W3 + FUSED, :]                # (128, 128) output head

    # ---- layer 1 on the MXU: the 1.0 lane of x8 multiplies the b1 row, so the
    # bias is folded in; lanes 3..7 of x8 are 0 so rows b2/b3 don't contribute.
    h = jnp.tanh(jnp.dot(x8, w1, preferred_element_type=jnp.float32))

    # ---- layer 2: one fused 128x128 MXU matmul (pi and v block-diagonal) ----
    h = jnp.tanh(jnp.dot(h, w2, preferred_element_type=jnp.float32) + b2)

    # ---- layer 3: mean | value | exp(log_std) | zeros (W3 std cols are zero) ----
    out = jnp.dot(h, w3, preferred_element_type=jnp.float32) + b3

    out_ref[...] = out[:, :OUT_LANES]                  # 8-lane packed output


def _round_up(x, m):
    return ((x + m - 1) // m) * m


def pack_params(p):
    """Packs all weights/biases/exp(log_std) into one (SLAB_ROWS, 128) f32 slab."""
    small = jnp.zeros((R_W2, LANES), jnp.float32)
    small = small.at[0:OBS_DIM, 0:HIDDEN].set(p["pi_w1"])
    small = small.at[0:OBS_DIM, HIDDEN:FUSED].set(p["v_w1"])
    small = small.at[R_B1, 0:HIDDEN].set(p["pi_b1"][0])
    small = small.at[R_B1, HIDDEN:FUSED].set(p["v_b1"][0])
    small = small.at[R_B2, 0:HIDDEN].set(p["pi_b2"][0])
    small = small.at[R_B2, HIDDEN:FUSED].set(p["v_b2"][0])
    small = small.at[R_B3, MEAN_LO:MEAN_HI].set(p["pi_b3"][0])
    small = small.at[R_B3, VALUE_LANE].set(p["v_b3"][0, 0])
    # std baked in as exp(log_std) -> no mask/exp epilogue in the kernel.
    small = small.at[R_B3, STD_LO:STD_HI].set(jnp.exp(p["log_std"][0]))

    w2 = jnp.zeros((FUSED, LANES), jnp.float32)
    w2 = w2.at[:HIDDEN, :HIDDEN].set(p["pi_w2"])
    w2 = w2.at[HIDDEN:, HIDDEN:].set(p["v_w2"])

    w3 = jnp.zeros((FUSED, LANES), jnp.float32)
    w3 = w3.at[:HIDDEN, MEAN_LO:MEAN_HI].set(p["pi_w3"])
    w3 = w3.at[HIDDEN:, VALUE_LANE:VALUE_LANE + 1].set(p["v_w3"])

    return jnp.concatenate([small, w2, w3], axis=0)    # (264, 128)


def ppo_policy_forward(obs, packed_slab):
    """Fused PPOPolicy forward. Returns (mean, std, value) like torch forward()."""
    B = obs.shape[0]
    # Aim for >=2 grid steps on moderate batches (v7x: 2 TCs share the
    # "parallel" batch axis); cap the tile at 2048 rows (well under VMEM).
    tb = min(2048, _round_up(max((B + 1) // 2, 1), 8))
    B_pad = _round_up(B, tb)
    grid = (B_pad // tb,)

    # Pad obs to 8 lanes with a constant-1.0 column (folds the layer-1 bias into
    # the MXU matmul) and to a sublane-aligned batch.
    x8 = jnp.zeros((B_pad, IN_LANES), jnp.float32)
    x8 = x8.at[:B, :OBS_DIM].set(obs.astype(jnp.float32))
    x8 = x8.at[:, OBS_DIM].set(1.0)

    out = pl.pallas_call(
        _ppo_fused_kernel,
        out_shape=jax.ShapeDtypeStruct((B_pad, OUT_LANES), jnp.float32),
        grid=grid,
        in_specs=[
            pl.BlockSpec((tb, IN_LANES), lambda i: (i, 0)),          # padded obs tile
            pl.BlockSpec((SLAB_ROWS, LANES), lambda i: (0, 0)),      # weights (resident)
        ],
        out_specs=pl.BlockSpec((tb, OUT_LANES), lambda i: (i, 0)),
        compiler_params=pltpu.CompilerParams(
            dimension_semantics=("parallel",)),
    )(x8, packed_slab)

    mean = out[:B, MEAN_LO:MEAN_HI]
    value = out[:B, VALUE_LANE:VALUE_LANE + 1]
    std = out[:B, STD_LO:STD_HI]
    return mean, std, value


def _linear_init(key, fan_in, fan_out):
    """PyTorch nn.Linear default init: U(-1/sqrt(fan_in), 1/sqrt(fan_in))."""
    kw, kb = jax.random.split(key)
    bound = 1.0 / jnp.sqrt(jnp.float32(fan_in))
    w = jax.random.uniform(kw, (fan_in, fan_out), jnp.float32, -bound, bound)
    b = jax.random.uniform(kb, (1, fan_out), jnp.float32, -bound, bound)
    return w, b


def init_params(key):
    keys = jax.random.split(key, 6)
    pi_w1, pi_b1 = _linear_init(keys[0], OBS_DIM, HIDDEN)
    pi_w2, pi_b2 = _linear_init(keys[1], HIDDEN, HIDDEN)
    pi_w3, pi_b3 = _linear_init(keys[2], HIDDEN, ACTION_DIM)
    v_w1, v_b1 = _linear_init(keys[3], OBS_DIM, HIDDEN)
    v_w2, v_b2 = _linear_init(keys[4], HIDDEN, HIDDEN)
    v_w3, v_b3 = _linear_init(keys[5], HIDDEN, 1)
    log_std = jnp.full((1, ACTION_DIM), jnp.log(jnp.float32(INITIAL_STD)),
                       dtype=jnp.float32)
    return dict(
        pi_w1=pi_w1, pi_b1=pi_b1, pi_w2=pi_w2, pi_b2=pi_b2,
        pi_w3=pi_w3, pi_b3=pi_b3,
        v_w1=v_w1, v_b1=v_b1, v_w2=v_w2, v_b2=v_b2,
        v_w3=v_w3, v_b3=v_b3,
        log_std=log_std,
    )


def _reference_forward(obs, p):
    """Pure-JAX reference for correctness checking."""
    h = jnp.tanh(obs @ p["pi_w1"] + p["pi_b1"])
    h = jnp.tanh(h @ p["pi_w2"] + p["pi_b2"])
    mean = h @ p["pi_w3"] + p["pi_b3"]
    std = jnp.broadcast_to(jnp.exp(p["log_std"]), mean.shape)
    hv = jnp.tanh(obs @ p["v_w1"] + p["v_b1"])
    hv = jnp.tanh(hv @ p["v_w2"] + p["v_b2"])
    value = hv @ p["v_w3"] + p["v_b3"]
    return mean, std, value


if __name__ == "__main__":
    key = jax.random.PRNGKey(0)
    k_params, k_obs = jax.random.split(key)

    params = init_params(k_params)
    packed = pack_params(params)          # packed once; repack after optimizer steps

    batch = 6                              # non-multiple of 8: exercises pad/slice path
    obs = jax.random.normal(k_obs, (batch, OBS_DIM), dtype=jnp.float32)

    mean, std, value = jax.block_until_ready(ppo_policy_forward(obs, packed))

    ref_mean, ref_std, ref_value = _reference_forward(obs, params)
    assert mean.shape == (batch, ACTION_DIM)
    assert std.shape == (batch, ACTION_DIM)
    assert value.shape == (batch, 1)
    assert jnp.allclose(mean, ref_mean, atol=1e-4, rtol=1e-4)
    assert jnp.allclose(std, ref_std, atol=1e-4, rtol=1e-4)
    assert jnp.allclose(value, ref_value, atol=1e-4, rtol=1e-4)

    # TODO(synk): dist.sample()/log_prob (get_action) and the Adam/clip-grad
    # update step are host-side training utilities, not part of the forward hot path.
    print("KERNEL_OK")
</pallas_src>

<mosaic_0001>
module attributes {stable_mosaic.version = 11 : i64} {
  func.func @_ppo_fused_kernel(%arg0: i32, %arg1: memref<8x8xf32, #tpu.memory_space<vmem>>, %arg2: memref<264x128xf32, #tpu.memory_space<vmem>>, %arg3: memref<8x8xf32, #tpu.memory_space<vmem>>) attributes {dimension_semantics = [#tpu.dimension_semantics<parallel>], iteration_bounds = array<i64: 1>, scalar_prefetch = 0 : i64, scratch_operands = 0 : i64, tpu.core_type = #tpu.core_type<tc>, window_params = [{transform_indices = @transform_0, window_bounds = array<i64: 8, 8>}, {pipeline_mode = #tpu.pipeline_mode<synchronous>, transform_indices = @transform_1, window_bounds = array<i64: 264, 128>}, {transform_indices = @transform_2, window_bounds = array<i64: 8, 8>}]} {
    %c0 = arith.constant 0 : index
    %c0_0 = arith.constant 0 : index
    %0 = vector.load %arg1[%c0, %c0_0] : memref<8x8xf32, #tpu.memory_space<vmem>>, vector<8x8xf32>
    %c0_1 = arith.constant 0 : index
    %c0_2 = arith.constant 0 : index
    %1 = vector.load %arg2[%c0_1, %c0_2] : memref<264x128xf32, #tpu.memory_space<vmem>>, vector<8x128xf32>
    %c3 = arith.constant 3 : index
    %c0_3 = arith.constant 0 : index
    %2 = vector.load %arg2[%c3, %c0_3] : memref<264x128xf32, #tpu.memory_space<vmem>>, vector<1x128xf32>
    %c4 = arith.constant 4 : index
    %c0_4 = arith.constant 0 : index
    %3 = vector.load %arg2[%c4, %c0_4] : memref<264x128xf32, #tpu.memory_space<vmem>>, vector<1x128xf32>
    %c8 = arith.constant 8 : index
    %c0_5 = arith.constant 0 : index
    %4 = vector.load %arg2[%c8, %c0_5] : memref<264x128xf32, #tpu.memory_space<vmem>>, vector<128x128xf32>
    %c136 = arith.constant 136 : index
    %c0_6 = arith.constant 0 : index
    %5 = vector.load %arg2[%c136, %c0_6] : memref<264x128xf32, #tpu.memory_space<vmem>>, vector<128x128xf32>
    %cst = arith.constant dense<0.000000e+00> : vector<8x128xf32>
    %6 = tpu.matmul %0, %1, %cst {dimension_numbers = #tpu.dot_dimension_numbers<[1], [0], [0], [1], [0, 0, 1, 1], [], []>} : vector<8x8xf32>, vector<8x128xf32>, vector<8x128xf32> -> vector<8x128xf32>
    %7 = math.tanh %6 : vector<8x128xf32>
    %cst_7 = arith.constant dense<0.000000e+00> : vector<8x128xf32>
    %8 = tpu.matmul %7, %4, %cst_7 {dimension_numbers = #tpu.dot_dimension_numbers<[1], [0], [0], [1], [0, 0, 1, 1], [], []>} : vector<8x128xf32>, vector<128x128xf32>, vector<8x128xf32> -> vector<8x128xf32>
    %9 = vector.broadcast %2 : vector<1x128xf32> to vector<8x128xf32>
    %10 = arith.addf %8, %9 : vector<8x128xf32>
    %11 = math.tanh %10 : vector<8x128xf32>
    %cst_8 = arith.constant dense<0.000000e+00> : vector<8x128xf32>
    %12 = tpu.matmul %11, %5, %cst_8 {dimension_numbers = #tpu.dot_dimension_numbers<[1], [0], [0], [1], [0, 0, 1, 1], [], []>} : vector<8x128xf32>, vector<128x128xf32>, vector<8x128xf32> -> vector<8x128xf32>
    %13 = vector.broadcast %3 : vector<1x128xf32> to vector<8x128xf32>
    %14 = arith.addf %12, %13 : vector<8x128xf32>
    %15 = vector.extract_strided_slice %14 {offsets = [0, 0], sizes = [8, 8], strides = [1, 1]} : vector<8x128xf32> to vector<8x8xf32>
    %c0_9 = arith.constant 0 : index
    %c0_10 = arith.constant 0 : index
    %16 = vector.load %arg3[%c0_9, %c0_10] : memref<8x8xf32, #tpu.memory_space<vmem>>, vector<8x8xf32>
    tpu.vector_store %arg3[%c0_9, %c0_10], %15 {strides = array<i32>} : memref<8x8xf32, #tpu.memory_space<vmem>>, vector<8x8xf32>,
    return
  }
  func.func @transform_0(%arg0: i32) -> (i32, i32) {
    %c0_i32 = arith.constant 0 : i32
    %c0_i32_0 = arith.constant 0 : i32
    return %arg0, %c0_i32 : i32, i32
  }
  func.func @transform_1(%arg0: i32) -> (i32, i32) {
    %c0_i32 = arith.constant 0 : i32
    %c0_i32_0 = arith.constant 0 : i32
    %c0_i32_1 = arith.constant 0 : i32
    return %c0_i32, %c0_i32_0 : i32, i32
  }
  func.func @transform_2(%arg0: i32) -> (i32, i32) {
    %c0_i32 = arith.constant 0 : i32
    %c0_i32_0 = arith.constant 0 : i32
    return %arg0, %c0_i32 : i32, i32
  }
}

</mosaic_0001>

<llo_original>
// kernel: tpu_custom_call.1
$region0: #{tpu_custom_call.1}
  #allocation0 [shape = 'u32[]', space=smem, size = 0x4, offset = 0x4, fixed_abs, tag = 'smem constant byte address 0x4 - core index']
  #allocation1 [shape = 'u32[72,128]{1,0:T(1,128)}', space=vmem, size = 0x9000, scoped, tag = 'internal scratch']
  %s0 = inlined_call_operand.hbm [shape: f32[8,8], index: 0, kind: input, shape index: {}]
  %s1 = inlined_call_operand.hbm [shape: f32[264,128], index: 1, kind: input, shape index: {}]
  %s2 = inlined_call_operand.hbm [shape: f32[8,8], index: 2, kind: output, shape index: {}]
  %s3 = sld [smem:[#allocation0]]
  $region26: #{tpu_custom_call.1} parent=0
    _
  %s5 = ssub.s32 1, %s3
  %s6 = scalar_select 0, %s5, %s3
  $region1: #{tpu_custom_call.1} parent=0
    #allocation2 [shape = 'u8[4096]{0}', space=vmem, size = 0x1000, scoped, tag = 'input window, operand 0, single buffered']
    #allocation3 [shape = 's32[1]{0}', space=sflag, size = 0x4, scoped, tag = 'scoped memory for tpu_custom_call.1']
    #allocation4 [shape = 's32[1]{0}', space=sflag, size = 0x4, scoped, tag = 'scoped memory for tpu_custom_call.1']
    #allocation5 [shape = 'u8[135168]{0}', space=vmem, size = 0x21000, scoped, tag = 'input window, operand 1, single buffered']
    #allocation6 [shape = 's32[1]{0}', space=sflag, size = 0x4, scoped, tag = 'scoped memory for tpu_custom_call.1']
    #allocation7 [shape = 'u8[4096]{0}', space=vmem, size = 0x1000, scoped, tag = 'output window, operand 0, single buffered']
    %7 = vsyncpa [#allocation3], 0
    %8 = vsyncpa [#allocation6], 0
    %9 = vsyncpa [#allocation4], 0
    // Predicated region
    $region2: #{tpu_custom_call.1} parent=1 // pred_check
      _
    $region3: #{tpu_custom_call.1} parent=1 // pred_check_branch
      %11 = sbr.rel (0) target = $region5
    $region4: #{tpu_custom_call.1} parent=1 // pred_region
      %13 = vsyncadd [#allocation3], 0
      %s15 = sshll.u32 %s0, 4
      %s16 = int_to_ptr.hbm [resolvable:$true] %s15
      %s17 = sshll.u32 [#allocation2], 4
      %s18 = int_to_ptr.vmem [resolvable:$true] %s17
      %20 = dma.hbm_to_vmem [thread:$0]  %s16, 128, %s18, [#allocation3]
    $region5: #{tpu_custom_call.1} parent=1 // pred_fallthru
      _
    // Predicated region
    $region6: #{tpu_custom_call.1} parent=1 // pred_check
      _
    $region7: #{tpu_custom_call.1} parent=1 // pred_check_branch
      %22 = sbr.rel (0) target = $region9
    $region8: #{tpu_custom_call.1} parent=1 // pred_region
      %24 = vsyncadd [#allocation6], 0
      %s25 = sshll.u32 %s1, 4
      %s26 = int_to_ptr.hbm [resolvable:$true] %s25
      %s27 = sshll.u32 [#allocation5], 4
      %s28 = int_to_ptr.vmem [resolvable:$true] %s27
      %33 = dma.hbm_to_vmem [thread:$0]  %s26, 4224, %s28, [#allocation6], 128, 128, 8
    $region9: #{tpu_custom_call.1} parent=1 // pred_fallthru
      _
    // Predicated region
    $region10: #{tpu_custom_call.1} parent=1 // pred_check
      _
    $region11: #{tpu_custom_call.1} parent=1 // pred_check_branch
      %35 = sbr.rel (0) target = $region13
    $region12: #{tpu_custom_call.1} parent=1 // pred_region
      %37 = dma.done [#allocation3], 128
    $region13: #{tpu_custom_call.1} parent=1 // pred_fallthru
      _
    // Predicated region
    $region14: #{tpu_custom_call.1} parent=1 // pred_check
      _
    $region15: #{tpu_custom_call.1} parent=1 // pred_check_branch
      %39 = sbr.rel (0) target = $region17
    $region16: #{tpu_custom_call.1} parent=1 // pred_region
      %41 = dma.done [#allocation6], 4224
    $region17: #{tpu_custom_call.1} parent=1 // pred_fallthru
      _
    %v42 = vld [vmem:[#allocation2] sm:$0xff]
    %v43 = vld [vmem:[#allocation5] sm:$0xff]
    %v44 = vld [vmem:[#allocation5 + $0x3] sm:$0x1]
    %v45 = vld [vmem:[#allocation5 + $0x4] sm:$0x1]
    %v46 = vld [vmem:[#allocation5 + $0x8] sm:$0xff]
    %v47 = vld [vmem:[#allocation5 + $0x10] sm:$0xff]
    %v48 = vld [vmem:[#allocation5 + $0x18] sm:$0xff]
    %v49 = vld [vmem:[#allocation5 + $0x20] sm:$0xff]
    %v50 = vld [vmem:[#allocation5 + $0x28] sm:$0xff]
    %v51 = vld [vmem:[#allocation5 + $0x30] sm:$0xff]
    %v52 = vld [vmem:[#allocation5 + $0x38] sm:$0xff]
    %v53 = vld [vmem:[#allocation5 + $0x40] sm:$0xff]
    %v54 = vld [vmem:[#allocation5 + $0x48] sm:$0xff]
    %v55 = vld [vmem:[#allocation5 + $0x50] sm:$0xff]
    %v56 = vld [vmem:[#allocation5 + $0x58] sm:$0xff]
    %v57 = vld [vmem:[#allocation5 + $0x60] sm:$0xff]
    %v58 = vld [vmem:[#allocation5 + $0x68] sm:$0xff]
    %v59 = vld [vmem:[#allocation5 + $0x70] sm:$0xff]
    %v60 = vld [vmem:[#allocation5 + $0x78] sm:$0xff]
    %v61 = vld [vmem:[#allocation5 + $0x80] sm:$0xff]
    %v62 = vld [vmem:[#allocation5 + $0x88] sm:$0xff]
    %v63 = vld [vmem:[#allocation5 + $0x90] sm:$0xff]
    %v64 = vld [vmem:[#allocation5 + $0x98] sm:$0xff]
    %v65 = vld [vmem:[#allocation5 + $0xa0] sm:$0xff]
    %v66 = vld [vmem:[#allocation5 + $0xa8] sm:$0xff]
    %v67 = vld [vmem:[#allocation5 + $0xb0] sm:$0xff]
    %v68 = vld [vmem:[#allocation5 + $0xb8] sm:$0xff]
    %v69 = vld [vmem:[#allocation5 + $0xc0] sm:$0xff]
    %v70 = vld [vmem:[#allocation5 + $0xc8] sm:$0xff]
    %v71 = vld [vmem:[#allocation5 + $0xd0] sm:$0xff]
    %v72 = vld [vmem:[#allocation5 + $0xd8] sm:$0xff]
    %v73 = vld [vmem:[#allocation5 + $0xe0] sm:$0xff]
    %v74 = vld [vmem:[#allocation5 + $0xe8] sm:$0xff]
    %v75 = vld [vmem:[#allocation5 + $0xf0] sm:$0xff]
    %v76 = vld [vmem:[#allocation5 + $0xf8] sm:$0xff]
    %v77 = vld [vmem:[#allocation5 + $0x100] sm:$0xff]
    %vm78 = vcmask 64512
    %v80 = vsel %vm78, %v42, 0
    %82 = vmatpush.msra.mxu0 0.0
    %83 = vmatpush.msra.mxu0 0.0
    %84 = vmatpush.msra.mxu0 0.0
    %85 = vmatpush.msra.mxu0 0.0
    %86 = vmatpush.msra.mxu0 0.0
    %87 = vmatpush.msra.mxu0 0.0
    %88 = vmatpush.msra.mxu0 0.0
    %89 = vmatpush.msra.mxu0 0.0
    %90 = vmatpush.msra.mxu0 0.0
    %91 = vmatpush.msra.mxu0 0.0
    %92 = vmatpush.msra.mxu0 0.0
    %93 = vmatpush.msra.mxu0 0.0
    %94 = vmatpush.msra.mxu0 0.0
    %95 = vmatpush.msra.mxu0 0.0
    %96 = vmatpush.msra.mxu0 0.0
    %97 = vmatpush.msra.mxu0 %v43
    %98 = vmatmul.f32.gmra.mxu0 %v80
    %v99 = vpop.f32.mrf.mxu0
    %v100 = vadd.f32 0.0, %v99
    %101 = vdwg.mxu0
    %v102 = vtanh.pop %v100
    %v103 = vperm.slane %v44, 0
    %104 = vmatpush.msra.mxu0 %v61
    %105 = vmatpush.msra.mxu0 %v60
    %106 = vmatpush.msra.mxu0 %v59
    %107 = vmatpush.msra.mxu0 %v58
    %108 = vmatpush.msra.mxu0 %v57
    %109 = vmatpush.msra.mxu0 %v56
    %110 = vmatpush.msra.mxu0 %v55
    %111 = vmatpush.msra.mxu0 %v54
    %112 = vmatpush.msra.mxu0 %v53
    %113 = vmatpush.msra.mxu0 %v52
    %114 = vmatpush.msra.mxu0 %v51
    %115 = vmatpush.msra.mxu0 %v50
    %116 = vmatpush.msra.mxu0 %v49
    %117 = vmatpush.msra.mxu0 %v48
    %118 = vmatpush.msra.mxu0 %v47
    %119 = vmatpush.msra.mxu0 %v46
    %120 = vmatmul.f32.gmra.mxu0 %v102
    %v121 = vpop.f32.mrf.mxu0
    %v122 = vadd.f32 %v103, %v121
    %123 = vdwg.mxu0
    %v124 = vtanh.pop %v122
    %v125 = vperm.slane %v45, 0
    %126 = vmatpush.msra.mxu0 %v77
    %127 = vmatpush.msra.mxu0 %v76
    %128 = vmatpush.msra.mxu0 %v75
    %129 = vmatpush.msra.mxu0 %v74
    %130 = vmatpush.msra.mxu0 %v73
    %131 = vmatpush.msra.mxu0 %v72
    %132 = vmatpush.msra.mxu0 %v71
    %133 = vmatpush.msra.mxu0 %v70
    %134 = vmatpush.msra.mxu0 %v69
    %135 = vmatpush.msra.mxu0 %v68
    %136 = vmatpush.msra.mxu0 %v67
    %137 = vmatpush.msra.mxu0 %v66
    %138 = vmatpush.msra.mxu0 %v65
    %139 = vmatpush.msra.mxu0 %v64
    %140 = vmatpush.msra.mxu0 %v63
    %141 = vmatpush.msra.mxu0 %v62
    %142 = vmatmul.f32.gmra.mxu0 %v124
    %v143 = vpop.f32.mrf.mxu0
    %v144 = vadd.f32 %v125, %v143
    %145 = vdwg.mxu0
    %146 = vst.msk [vmem:[#allocation7] sm:$0xff] %vm78, %v144
    // Predicated region
    $region18: #{tpu_custom_call.1} parent=1 // pred_check
      _
    $region19: #{tpu_custom_call.1} parent=1 // pred_check_branch
      %148 = sbr.rel (0) target = $region21
    $region20: #{tpu_custom_call.1} parent=1 // pred_region
      %150 = vsyncadd [#allocation4], 0
      %s152 = sshll.u32 [#allocation7], 4
      %s153 = int_to_ptr.vmem [resolvable:$true] %s152
      %s154 = sshll.u32 %s2, 4
      %s155 = int_to_ptr.hbm [resolvable:$true] %s154
      %157 = dma.vmem_to_hbm [thread:$0]  %s153, 128, %s155, [#allocation4]
    $region21: #{tpu_custom_call.1} parent=1 // pred_fallthru
      _
    // Predicated region
    $region22: #{tpu_custom_call.1} parent=1 // pred_check
      _
    $region23: #{tpu_custom_call.1} parent=1 // pred_check_branch
      %159 = sbr.rel (0) target = $region25
    $region24: #{tpu_custom_call.1} parent=1 // pred_region
      %161 = dma.done [#allocation4], 128
    $region25: #{tpu_custom_call.1} parent=1 // pred_fallthru
      _
    %162 = vsyncpa [#allocation3], 1
    %163 = vsyncpa [#allocation6], 1
    %164 = vsyncpa [#allocation4], 1

</llo_original>
